<compile_context>
chip_gen: v7x
topology: tpu7x:2x2x1
jax: 0.10.0
libtpu: 0.0.40
codegen_flags: <defaults>
</compile_context>

<pallas_src>
import numpy as np
import jax
import jax.numpy as jnp
from jax import lax
from jax.experimental import pallas as pl
from jax.experimental.pallas import tpu as pltpu

SUBLANE = 8          # sublane granularity (row padding for small batches)
LANE = 128           # lane width: hidden / knowledge dims padded to this
ROW_BLOCK_MAX = 256  # rows per grid step (64-256 per perf review)


def _round_up(x, m):
    return (x + m - 1) // m * m


def _next_pow2(x):
    return 1 if x <= 1 else 1 << (int(x) - 1).bit_length()


def _pad_rows(n):
    n = max(int(n), 1)
    if n <= ROW_BLOCK_MAX:
        return _round_up(n, SUBLANE)
    return _round_up(n, ROW_BLOCK_MAX)


# ----------------------------- Pallas kernel ------------------------------ #
def _knowledge_matmul_kernel(idx_ref, wt_ref, b_ref, o_ref):
    """out = multi_hot(idx) @ wt + bias, one (R, H_pad) tile per grid step.

    idx_ref : VMEM (R, T)        int32  -- tag indices, sentinel == K_pad
    wt_ref  : VMEM (K_pad, H_pad)       -- pre-transposed padded weight (resident)
    b_ref   : VMEM (1, H_pad)    f32
    o_ref   : VMEM (R, H_pad)    f32
    """
    rows = o_ref.shape[0]
    k_pad = wt_ref.shape[0]
    n_slots = idx_ref.shape[1]

    # Build the multi-hot block on the VPU: enc[r, k] = any_t(idx[r, t] == k).
    col = lax.broadcasted_iota(jnp.int32, (rows, k_pad), 1)
    idx = idx_ref[...]                                  # single (R, T) load
    enc = jnp.zeros((rows, k_pad), jnp.float32)
    for t in range(n_slots):                            # static unroll, T small
        enc = jnp.where(col == idx[:, t:t + 1], 1.0, enc)

    # One MXU push per block; full-tile lane/sublane-dense store.
    acc = jnp.dot(enc.astype(wt_ref.dtype), wt_ref[...],
                  preferred_element_type=jnp.float32)
    o_ref[...] = acc + b_ref[...]


def sparse_linear_pallas(idx, wt_pad, b_pad):
    """idx: (B_pad, T) int32, wt_pad: (K_pad, H_pad), b_pad: (1, H_pad) f32."""
    b_rows, n_slots = idx.shape
    k_pad, h_pad = wt_pad.shape
    rows_per_block = min(b_rows, ROW_BLOCK_MAX)
    assert b_rows % rows_per_block == 0 and rows_per_block % SUBLANE == 0
    assert h_pad % LANE == 0 and k_pad % LANE == 0
    grid = (b_rows // rows_per_block,)

    # Explicit VMEM budget for realistic sizes (weight is double-buffered by
    # the pipeliner even with a constant index map).
    # TODO(synk): single-buffer the resident weight (pipeline_mode) or keep it
    # in HBM (memory_space=pl.ANY) with manual row-gather DMAs once
    # K_pad * H_pad exceeds the generation's VMEM budget (64 MiB on v7x).
    vmem_need = 2 * (wt_pad.size * wt_pad.dtype.itemsize
                     + b_pad.size * 4
                     + rows_per_block * h_pad * 4
                     + rows_per_block * n_slots * 4)
    vmem_limit = None
    if vmem_need > 16 * 1024 * 1024:
        vmem_limit = int(min(vmem_need * 5 // 4, 100 * 1024 * 1024))

    return pl.pallas_call(
        _knowledge_matmul_kernel,
        out_shape=jax.ShapeDtypeStruct((b_rows, h_pad), jnp.float32),
        grid=grid,
        in_specs=[
            pl.BlockSpec((rows_per_block, n_slots), lambda i: (i, 0)),  # indices
            pl.BlockSpec((k_pad, h_pad), lambda i: (0, 0)),             # weight (resident)
            pl.BlockSpec((1, h_pad), lambda i: (0, 0)),                 # bias
        ],
        out_specs=pl.BlockSpec((rows_per_block, h_pad), lambda i: (i, 0)),
        compiler_params=pltpu.CompilerParams(
            dimension_semantics=("parallel",),
            vmem_limit_bytes=vmem_limit,
        ),
    )(idx, wt_pad, b_pad)


# ----------------------------- Model wrapper ------------------------------ #
class KnowledgeModelPallas:
    """JAX/Pallas port of KnowledgeModel (multi-hot encode + nn.Linear)."""

    def __init__(self, tags, hidden_size, key, param_dtype=jnp.float32):
        self.tags = list(tags)
        self.tag_to_idx = {t: i for i, t in enumerate(self.tags)}
        self.vector_size = len(self.tags)          # know_num == TAGS_NUM
        self.hidden_size = hidden_size

        # nn.Linear-style uniform fan-in init; kept in PyTorch (H, K) layout
        # for the reference check.
        k_w, k_b = jax.random.split(key)
        bound = 1.0 / float(np.sqrt(self.vector_size))
        self.weight = jax.random.uniform(
            k_w, (hidden_size, self.vector_size), jnp.float32, -bound, bound)
        self.bias = jax.random.uniform(
            k_b, (hidden_size,), jnp.float32, -bound, bound)

        # ---- One-time kernel-layout preparation (hoisted out of forward) ----
        self.h_pad = _round_up(max(hidden_size, LANE), LANE)      # lane-dense out
        self.k_pad = _round_up(max(self.vector_size, LANE), LANE)  # MXU K dim
        self.sentinel = self.k_pad                  # never matches a column

        # param_dtype=jnp.bfloat16 halves VMEM residence / DMA bytes (v7x);
        # accumulation stays f32 inside the kernel.
        wt = jnp.transpose(self.weight)             # (K, H) — transposed ONCE
        self.wt_pad = (
            jnp.zeros((self.k_pad, self.h_pad), param_dtype)
            .at[: self.vector_size, :hidden_size].set(wt.astype(param_dtype)))
        self.b_pad = (
            jnp.zeros((1, self.h_pad), jnp.float32)
            .at[0, :hidden_size].set(self.bias))

        wt_c, b_c, h = self.wt_pad, self.b_pad, self.hidden_size

        @jax.jit
        def device_forward(idx):                    # idx: (B_pad, T) int32
            return sparse_linear_pallas(idx, wt_c, b_c)[:, :h]

        self._device_forward = device_forward

    # Host-side glue: parse the string into deduplicated tag indices.
    def encode_indices(self, knowledge: str):
        seen, idxs = set(), []
        for tag in knowledge.split(","):
            t = tag.strip()
            i = self.tag_to_idx.get(t)
            if i is not None and i not in seen:     # unknown tags dropped
                seen.add(i)
                idxs.append(i)
        return idxs

    def _indices_matrix(self, knowledge_list):
        rows = [self.encode_indices(s) for s in knowledge_list]
        # Tag-slot count bounded by the batch's real max (bucketed to pow2 to
        # bound recompiles), never truncating valid tags.
        max_t = max((len(r) for r in rows), default=0)
        n_slots = _next_pow2(max(max_t, 1))
        b_pad = _pad_rows(len(rows))
        mat = np.full((b_pad, n_slots), self.sentinel, dtype=np.int32)
        for r, idxs in enumerate(rows):
            if idxs:
                mat[r, : len(idxs)] = np.asarray(idxs, dtype=np.int32)
        return jnp.asarray(mat)

    def __call__(self, knowledge: str):
        idx = self._indices_matrix([knowledge])     # (8, T)
        return self._device_forward(idx)[0]         # (hidden_size,)

    def forward_batch(self, knowledge_list):
        knowledge_list = list(knowledge_list)
        idx = self._indices_matrix(knowledge_list)
        return self._device_forward(idx)[: len(knowledge_list)]


# --------------------------------- main ----------------------------------- #
def _reference_forward(model, knowledge):
    """Exact f32 reference on host (numpy), matching the PyTorch forward."""
    enc = np.zeros((model.vector_size,), np.float32)
    for tag in knowledge.split(","):
        t = tag.strip()
        if t in model.tag_to_idx:
            enc[model.tag_to_idx[t]] = 1.0
    w = np.asarray(model.weight, np.float32)
    b = np.asarray(model.bias, np.float32)
    return enc @ w.T + b


if __name__ == "__main__":
    key = jax.random.PRNGKey(0)

    TAGS = [f"tag{i}" for i in range(32)]     # Constants.TAGS (TAGS_NUM = 32)
    HIDDEN = 32

    model = KnowledgeModelPallas(TAGS, HIDDEN, key)

    knowledge_str = "tag3, tag7 , tag15,unknown_tag,tag31, tag3"
    out = jax.block_until_ready(model(knowledge_str))
    ref = _reference_forward(model, knowledge_str)
    assert out.shape == (HIDDEN,)
    # MXU f32 matmuls may use bf16 passes at default precision -> loose tol.
    assert jnp.allclose(out, jnp.asarray(ref), atol=2e-2, rtol=2e-2)

    # Batched path: several strings in one lane/sublane-dense pallas_call,
    # including an all-tags row (exercises the widest tag-slot bucket).
    batch = [knowledge_str, "tag0, tag1", "no_known_tags_here", "tag31",
             ",".join(TAGS)]
    outs = jax.block_until_ready(model.forward_batch(batch))
    assert outs.shape == (len(batch), HIDDEN)
    for s, o in zip(batch, outs):
        r = _reference_forward(model, s)
        assert jnp.allclose(o, jnp.asarray(r), atol=2e-2, rtol=2e-2)

    print("KERNEL_OK")
</pallas_src>

<mosaic_0001>
module attributes {stable_mosaic.version = 11 : i64} {
  func.func @_knowledge_matmul_kernel(%arg0: i32, %arg1: memref<8x4xi32, #tpu.memory_space<vmem>>, %arg2: memref<128x128xf32, #tpu.memory_space<vmem>>, %arg3: memref<1x128xf32, #tpu.memory_space<vmem>>, %arg4: memref<8x128xf32, #tpu.memory_space<vmem>>) attributes {dimension_semantics = [#tpu.dimension_semantics<parallel>], iteration_bounds = array<i64: 1>, scalar_prefetch = 0 : i64, scratch_operands = 0 : i64, tpu.core_type = #tpu.core_type<tc>, window_params = [{transform_indices = @transform_0, window_bounds = array<i64: 8, 4>}, {pipeline_mode = #tpu.pipeline_mode<synchronous>, transform_indices = @transform_1, window_bounds = array<i64: 128, 128>}, {pipeline_mode = #tpu.pipeline_mode<synchronous>, transform_indices = @transform_2, window_bounds = array<i64: 1, 128>}, {transform_indices = @transform_3, window_bounds = array<i64: 8, 128>}]} {
    %0 = tpu.iota {dimensions = array<i32: 1>} : vector<8x128xi32>
    %c0 = arith.constant 0 : index
    %c0_0 = arith.constant 0 : index
    %1 = vector.load %arg1[%c0, %c0_0] : memref<8x4xi32, #tpu.memory_space<vmem>>, vector<8x4xi32>
    %cst = arith.constant 0.000000e+00 : f32
    %2 = vector.broadcast %cst : f32 to vector<8x128xf32>
    %3 = vector.extract_strided_slice %1 {offsets = [0, 0], sizes = [8, 1], strides = [1, 1]} : vector<8x4xi32> to vector<8x1xi32>
    %4 = vector.broadcast %3 : vector<8x1xi32> to vector<8x128xi32>
    %5 = arith.cmpi eq, %0, %4 : vector<8x128xi32>
    %cst_1 = arith.constant 1.000000e+00 : f32
    %6 = vector.broadcast %cst_1 : f32 to vector<8x128xf32>
    %7 = arith.select %5, %6, %2 : vector<8x128xi1>, vector<8x128xf32>
    %8 = vector.extract_strided_slice %1 {offsets = [0, 1], sizes = [8, 1], strides = [1, 1]} : vector<8x4xi32> to vector<8x1xi32>
    %9 = vector.broadcast %8 : vector<8x1xi32> to vector<8x128xi32>
    %10 = arith.cmpi eq, %0, %9 : vector<8x128xi32>
    %cst_2 = arith.constant 1.000000e+00 : f32
    %11 = vector.broadcast %cst_2 : f32 to vector<8x128xf32>
    %12 = arith.select %10, %11, %7 : vector<8x128xi1>, vector<8x128xf32>
    %13 = vector.extract_strided_slice %1 {offsets = [0, 2], sizes = [8, 1], strides = [1, 1]} : vector<8x4xi32> to vector<8x1xi32>
    %14 = vector.broadcast %13 : vector<8x1xi32> to vector<8x128xi32>
    %15 = arith.cmpi eq, %0, %14 : vector<8x128xi32>
    %cst_3 = arith.constant 1.000000e+00 : f32
    %16 = vector.broadcast %cst_3 : f32 to vector<8x128xf32>
    %17 = arith.select %15, %16, %12 : vector<8x128xi1>, vector<8x128xf32>
    %18 = vector.extract_strided_slice %1 {offsets = [0, 3], sizes = [8, 1], strides = [1, 1]} : vector<8x4xi32> to vector<8x1xi32>
    %19 = vector.broadcast %18 : vector<8x1xi32> to vector<8x128xi32>
    %20 = arith.cmpi eq, %0, %19 : vector<8x128xi32>
    %cst_4 = arith.constant 1.000000e+00 : f32
    %21 = vector.broadcast %cst_4 : f32 to vector<8x128xf32>
    %22 = arith.select %20, %21, %17 : vector<8x128xi1>, vector<8x128xf32>
    %c0_5 = arith.constant 0 : index
    %c0_6 = arith.constant 0 : index
    %23 = vector.load %arg2[%c0_5, %c0_6] : memref<128x128xf32, #tpu.memory_space<vmem>>, vector<128x128xf32>
    %cst_7 = arith.constant dense<0.000000e+00> : vector<8x128xf32>
    %24 = tpu.matmul %22, %23, %cst_7 {dimension_numbers = #tpu.dot_dimension_numbers<[1], [0], [0], [1], [0, 0, 1, 1], [], []>} : vector<8x128xf32>, vector<128x128xf32>, vector<8x128xf32> -> vector<8x128xf32>
    %c0_8 = arith.constant 0 : index
    %c0_9 = arith.constant 0 : index
    %25 = vector.load %arg3[%c0_8, %c0_9] : memref<1x128xf32, #tpu.memory_space<vmem>>, vector<1x128xf32>
    %26 = vector.broadcast %25 : vector<1x128xf32> to vector<8x128xf32>
    %27 = arith.addf %24, %26 : vector<8x128xf32>
    %c0_10 = arith.constant 0 : index
    %c0_11 = arith.constant 0 : index
    %28 = vector.load %arg4[%c0_10, %c0_11] : memref<8x128xf32, #tpu.memory_space<vmem>>, vector<8x128xf32>
    tpu.vector_store %arg4[%c0_10, %c0_11], %27 {strides = array<i32>} : memref<8x128xf32, #tpu.memory_space<vmem>>, vector<8x128xf32>,
    return
  }
  func.func @transform_0(%arg0: i32) -> (i32, i32) {
    %c0_i32 = arith.constant 0 : i32
    %c0_i32_0 = arith.constant 0 : i32
    return %arg0, %c0_i32 : i32, i32
  }
  func.func @transform_1(%arg0: i32) -> (i32, i32) {
    %c0_i32 = arith.constant 0 : i32
    %c0_i32_0 = arith.constant 0 : i32
    %c0_i32_1 = arith.constant 0 : i32
    return %c0_i32, %c0_i32_0 : i32, i32
  }
  func.func @transform_2(%arg0: i32) -> (i32, i32) {
    %c0_i32 = arith.constant 0 : i32
    %c0_i32_0 = arith.constant 0 : i32
    %c0_i32_1 = arith.constant 0 : i32
    return %c0_i32, %c0_i32_0 : i32, i32
  }
  func.func @transform_3(%arg0: i32) -> (i32, i32) {
    %c0_i32 = arith.constant 0 : i32
    %c0_i32_0 = arith.constant 0 : i32
    return %arg0, %c0_i32 : i32, i32
  }
}

</mosaic_0001>

<llo_original>
// kernel: device_forward.1
$region0: #{device_forward.1}
  #allocation0 [shape = 'u32[]', space=smem, size = 0x4, offset = 0x4, fixed_abs, tag = 'smem constant byte address 0x4 - core index']
  #allocation1 [shape = 'u32[144,128]{1,0:T(1,128)}', space=vmem, size = 0x12000, scoped, tag = 'internal scratch']
  %s0 = inlined_call_operand.vmem [shape: s32[8,4], index: 0, kind: input, shape index: {}]
  %s1 = inlined_call_operand.hbm [shape: f32[128,128], index: 1, kind: input, shape index: {}]
  %s2 = inlined_call_operand.vmem [shape: f32[1,128], index: 2, kind: input, shape index: {}]
  %s3 = inlined_call_operand.hbm [shape: f32[8,128], index: 3, kind: output, shape index: {}]
  %s4 = sld [smem:[#allocation0]]
  $region26: #{device_forward.1} parent=0
    _
  %s6 = ssub.s32 1, %s4
  %s7 = scalar_select 0, %s6, %s4
  $region1: #{device_forward.1} parent=0
    #allocation2 [shape = 'u8[65536]{0}', space=vmem, size = 0x10000, scoped, tag = 'input window, operand 1, single buffered']
    #allocation3 [shape = 's32[1]{0}', space=sflag, size = 0x4, scoped, tag = 'scoped memory for device_forward.1']
    #allocation4 [shape = 's32[1]{0}', space=sflag, size = 0x4, scoped, tag = 'scoped memory for device_forward.1']
    #allocation5 [shape = 'u8[4096]{0}', space=vmem, size = 0x1000, scoped, tag = 'output window, operand 0, single buffered']
    %8 = vsyncpa [#allocation3], 0
    %9 = vsyncpa [#allocation4], 0
    // Predicated region
    $region2: #{device_forward.1} parent=1 // pred_check
      _
    $region3: #{device_forward.1} parent=1 // pred_check_branch
      %11 = sbr.rel (0) target = $region5
    $region4: #{device_forward.1} parent=1 // pred_region
      _
    $region5: #{device_forward.1} parent=1 // pred_fallthru
      _
    // Predicated region
    $region6: #{device_forward.1} parent=1 // pred_check
      _
    $region7: #{device_forward.1} parent=1 // pred_check_branch
      %13 = sbr.rel (0) target = $region9
    $region8: #{device_forward.1} parent=1 // pred_region
      %s15 = ssub.s32 2048, 2048
      %16 = vsyncadd [#allocation3], %s15
      %s17 = sshll.u32 [#allocation2], 4
      %s18 = int_to_ptr.vmem [resolvable:$true] %s17
      %23 = dma.hbm_to_vmem [thread:$0]  %s1, 2048, %s18, [#allocation3], 128, 128, 8
    $region9: #{device_forward.1} parent=1 // pred_fallthru
      _
    // Predicated region
    $region10: #{device_forward.1} parent=1 // pred_check
      _
    $region11: #{device_forward.1} parent=1 // pred_check_branch
      %25 = sbr.rel (0) target = $region13
    $region12: #{device_forward.1} parent=1 // pred_region
      _
    $region13: #{device_forward.1} parent=1 // pred_fallthru
      _
    // Predicated region
    $region14: #{device_forward.1} parent=1 // pred_check
      _
    $region15: #{device_forward.1} parent=1 // pred_check_branch
      %27 = sbr.rel (0) target = $region17
    $region16: #{device_forward.1} parent=1 // pred_region
      %28 = dma.done [#allocation3], 2048
    $region17: #{device_forward.1} parent=1 // pred_fallthru
      _
    %v29 = vlaneseq
    %v30 = vand.u32 %v29, 127
    %v31 = vld [vmem:[%s0] sm:$0xff]
    %32 = vset.pattern.permute.xlu0 0
    %33 = vperm.xlu0 %32, %v31
    %v34 = vpop.permute.xlu0 %33
    %vm35 = vcmp.eq.s32.totalorder %v30, %v34
    %v36 = vsel %vm35, 1.0, 0.0
    %37 = vset.pattern.permute.xlu0 1
    %38 = vperm.xlu0 %37, %v31
    %v39 = vpop.permute.xlu0 %38
    %vm40 = vcmp.eq.s32.totalorder %v30, %v39
    %v41 = vsel %vm40, 1.0, %v36
    %42 = vset.pattern.permute.xlu0 2
    %43 = vperm.xlu0 %42, %v31
    %v44 = vpop.permute.xlu0 %43
    %vm45 = vcmp.eq.s32.totalorder %v30, %v44
    %v46 = vsel %vm45, 1.0, %v41
    %47 = vset.pattern.permute.xlu0 3
    %48 = vperm.xlu0 %47, %v31
    %v49 = vpop.permute.xlu0 %48
    %vm50 = vcmp.eq.s32.totalorder %v30, %v49
    %v51 = vsel %vm50, 1.0, %v46
    %v52 = vld [vmem:[#allocation2] sm:$0xff]
    %v53 = vld [vmem:[#allocation2 + $0x8] sm:$0xff]
    %v54 = vld [vmem:[#allocation2 + $0x10] sm:$0xff]
    %v55 = vld [vmem:[#allocation2 + $0x18] sm:$0xff]
    %v56 = vld [vmem:[#allocation2 + $0x20] sm:$0xff]
    %v57 = vld [vmem:[#allocation2 + $0x28] sm:$0xff]
    %v58 = vld [vmem:[#allocation2 + $0x30] sm:$0xff]
    %v59 = vld [vmem:[#allocation2 + $0x38] sm:$0xff]
    %v60 = vld [vmem:[#allocation2 + $0x40] sm:$0xff]
    %v61 = vld [vmem:[#allocation2 + $0x48] sm:$0xff]
    %v62 = vld [vmem:[#allocation2 + $0x50] sm:$0xff]
    %v63 = vld [vmem:[#allocation2 + $0x58] sm:$0xff]
    %v64 = vld [vmem:[#allocation2 + $0x60] sm:$0xff]
    %v65 = vld [vmem:[#allocation2 + $0x68] sm:$0xff]
    %v66 = vld [vmem:[#allocation2 + $0x70] sm:$0xff]
    %v67 = vld [vmem:[#allocation2 + $0x78] sm:$0xff]
    %v68 = vld [vmem:[%s2] sm:$0x1]
    %v70 = vlaneseq
    %v71 = vshrl.u32 %v70, 7
    %v72 = vsub.s32 0, %v71
    %v73 = vrot.slane %v68, %v72
    %75 = vmatprep.subr.mxu0 0.0
    %76 = vmatpush1.msra.mxu0 %v52
    %77 = vmatprep.subr.mxu0 0.0
    %78 = vmatpush1.msra.mxu0 %v53
    %79 = vmatprep.subr.mxu0 0.0
    %80 = vmatpush1.msra.mxu0 %v54
    %81 = vmatprep.subr.mxu0 0.0
    %82 = vmatpush1.msra.mxu0 %v55
    %83 = vmatprep.subr.mxu0 0.0
    %84 = vmatpush1.msra.mxu0 %v56
    %85 = vmatprep.subr.mxu0 0.0
    %86 = vmatpush1.msra.mxu0 %v57
    %87 = vmatprep.subr.mxu0 0.0
    %88 = vmatpush1.msra.mxu0 %v58
    %89 = vmatprep.subr.mxu0 0.0
    %90 = vmatpush1.msra.mxu0 %v59
    %91 = vmatprep.subr.mxu0 0.0
    %92 = vmatpush1.msra.mxu0 %v60
    %93 = vmatprep.subr.mxu0 0.0
    %94 = vmatpush1.msra.mxu0 %v61
    %95 = vmatprep.subr.mxu0 0.0
    %96 = vmatpush1.msra.mxu0 %v62
    %97 = vmatprep.subr.mxu0 0.0
    %98 = vmatpush1.msra.mxu0 %v63
    %99 = vmatprep.subr.mxu0 0.0
    %100 = vmatpush1.msra.mxu0 %v64
    %101 = vmatprep.subr.mxu0 0.0
    %102 = vmatpush1.msra.mxu0 %v65
    %103 = vmatprep.subr.mxu0 0.0
    %104 = vmatpush1.msra.mxu0 %v66
    %105 = vmatprep.subr.mxu0 0.0
    %106 = vmatpush1.msra.mxu0 %v67
    %107 = vmatprep.subr.mxu0 0.0
    %108 = vmatpush1.msra.mxu0 0.0
    %109 = vmatprep.subr.mxu0 0.0
    %110 = vmatpush1.msra.mxu0 0.0
    %111 = vmatprep.subr.mxu0 0.0
    %112 = vmatpush1.msra.mxu0 0.0
    %113 = vmatprep.subr.mxu0 0.0
    %114 = vmatpush1.msra.mxu0 0.0
    %115 = vmatprep.subr.mxu0 0.0
    %116 = vmatpush1.msra.mxu0 0.0
    %117 = vmatprep.subr.mxu0 0.0
    %118 = vmatpush1.msra.mxu0 0.0
    %119 = vmatprep.subr.mxu0 0.0
    %120 = vmatpush1.msra.mxu0 0.0
    %121 = vmatprep.subr.mxu0 0.0
    %122 = vmatpush1.msra.mxu0 0.0
    %123 = vmatprep.subr.mxu0 0.0
    %124 = vmatpush1.msra.mxu0 0.0
    %125 = vmatprep.subr.mxu0 0.0
    %126 = vmatpush1.msra.mxu0 0.0
    %127 = vmatprep.subr.mxu0 0.0
    %128 = vmatpush1.msra.mxu0 0.0
    %129 = vmatprep.subr.mxu0 0.0
    %130 = vmatpush1.msra.mxu0 0.0
    %131 = vmatprep.subr.mxu0 0.0
    %132 = vmatpush1.msra.mxu0 0.0
    %133 = vmatprep.subr.mxu0 0.0
    %134 = vmatpush1.msra.mxu0 0.0
    %135 = vmatprep.subr.mxu0 0.0
    %136 = vmatpush1.msra.mxu0 0.0
    %137 = vmatprep.subr.mxu0 0.0
    %138 = vmatpush1.msra.mxu0 0.0
    %139 = vmatprep.mubr.f32.mxu0 0.0
    %140 = vmatmul.mubr.f32.gmra.mrb[0].mxu0 %v51
    %v141 = vpop.f32.mrb[0].mxu0
    %v142 = vadd.f32 %v73, %v141
    %v143 = vpop.f32.mrb[0].mxu0
    %144 = vdwg.mxu0
    %145 = vst [vmem:[#allocation5] sm:$0xff] %v142
    // Predicated region
    $region18: #{device_forward.1} parent=1 // pred_check
      _
    $region19: #{device_forward.1} parent=1 // pred_check_branch
      %147 = sbr.rel (0) target = $region21
    $region20: #{device_forward.1} parent=1 // pred_region
      %s149 = ssub.s32 128, 128
      %150 = vsyncadd [#allocation4], %s149
      %s152 = sshll.u32 [#allocation5], 4
      %s153 = int_to_ptr.vmem [resolvable:$true] %s152
      %155 = dma.vmem_to_hbm [thread:$0]  %s153, 128, %s3, [#allocation4]
    $region21: #{device_forward.1} parent=1 // pred_fallthru
      _
    // Predicated region
    $region22: #{device_forward.1} parent=1 // pred_check
      _
    $region23: #{device_forward.1} parent=1 // pred_check_branch
      %157 = sbr.rel (0) target = $region25
    $region24: #{device_forward.1} parent=1 // pred_region
      %158 = dma.done [#allocation4], 128
    $region25: #{device_forward.1} parent=1 // pred_fallthru
      _
    %159 = vsyncpa [#allocation3], 1
    %160 = vsyncpa [#allocation4], 1

</llo_original>
